<compile_context>
chip_gen: v7x
topology: tpu7x:2x2x1
jax: 0.10.0
libtpu: 0.0.40
codegen_flags: <defaults>
</compile_context>

<pallas_src>
import functools

import jax
import jax.numpy as jnp
from jax.experimental import pallas as pl
from jax.experimental.pallas import tpu as pltpu

BN_EPS = 1e-5   # PyTorch BatchNorm default eps
IN_EPS = 1e-3   # InstanceNorm2d eps used by the module


# ---------------------------------------------------------------------------
# Kernel 1: AdaptiveSampling
#   f_ref (N, C), p_ref (N, Cp)  ->  fm_ref (M, C), pm_ref (M, Cp)
# ---------------------------------------------------------------------------
def _sampling_kernel(f_ref, p_ref, s_ref, t_ref, wc_t_ref, bc_ref,
                     fm_ref, pm_ref):
    f = f_ref[...]                              # (N, C)
    p = p_ref[...]                              # (N, Cp)
    s = s_ref[...]                              # (1, C)  folded BN scale
    t = t_ref[...]                              # (1, C)  folded BN shift
    wc = wc_t_ref[...]                          # (C, M)
    bc = bc_ref[...]                            # (1, M)

    # InstanceNorm2d over the points axis (biased variance, eps=1e-3)
    mu = jnp.mean(f, axis=0, keepdims=True)
    var = jnp.mean((f - mu) ** 2, axis=0, keepdims=True)
    xin = (f - mu) * jax.lax.rsqrt(var + IN_EPS)
    # BatchNorm2d (eval, folded) + ReLU
    xr = jnp.maximum(xin * s + t, 0.0)
    # 1x1 conv C -> M, then softmax over the points axis (dim=2 in NCHW)
    logits = jnp.dot(xr, wc, preferred_element_type=jnp.float32) + bc   # (N, M)
    logits = logits - jnp.max(logits, axis=0, keepdims=True)
    e = jnp.exp(logits)
    w = e / jnp.sum(e, axis=0, keepdims=True)                           # (N, M)

    # F_M = W^T F, P_M = W^T P  (contract over the N points)
    dn = (((0,), (0,)), ((), ()))
    fm_ref[...] = jax.lax.dot_general(w, f, dn, preferred_element_type=jnp.float32)
    pm_ref[...] = jax.lax.dot_general(w, p, dn, preferred_element_type=jnp.float32)


# ---------------------------------------------------------------------------
# Kernel 2: AttentionPropagation (generic; used for inject / rectify1 / rectify)
#   m1_ref (N1, C), m2_ref (N2, C) -> out_ref (N1, C)
# ---------------------------------------------------------------------------
def _attn_kernel(m1_ref, m2_ref, wq_ref, bq_ref, wk_ref, bk_ref, wv_ref, bv_ref,
                 wmh_ref, bmh_ref, wc1_ref, bc1_ref, wc2_ref, bc2_ref,
                 out_ref, *, head):
    # hoist all weight/bias loads once (avoid re-materialized broadcasts)
    m1 = m1_ref[...]
    m2 = m2_ref[...]
    wq, bq = wq_ref[...], bq_ref[...]
    wk, bk = wk_ref[...], bk_ref[...]
    wv, bv = wv_ref[...], bv_ref[...]
    wmh, bmh = wmh_ref[...], bmh_ref[...]
    wc1, bc1 = wc1_ref[...], bc1_ref[...]
    wc2, bc2 = wc2_ref[...], bc2_ref[...]

    C = m1.shape[-1]
    dh = C // head
    scale = 1.0 / (dh ** 0.5)

    q = jnp.dot(m1, wq, preferred_element_type=jnp.float32) + bq        # (N1, C)
    k = jnp.dot(m2, wk, preferred_element_type=jnp.float32) + bk        # (N2, C)
    v = jnp.dot(m2, wv, preferred_element_type=jnp.float32) + bv        # (N2, C)

    dn_qk = (((1,), (1,)), ((), ()))   # contract the per-head channel dim
    heads = []
    for h in range(head):              # static unroll over heads
        sl = slice(h * dh, (h + 1) * dh)
        s = jax.lax.dot_general(q[:, sl], k[:, sl], dn_qk,
                                preferred_element_type=jnp.float32) * scale
        s = s - jnp.max(s, axis=-1, keepdims=True)
        e = jnp.exp(s)
        a = e / jnp.sum(e, axis=-1, keepdims=True)
        heads.append(jnp.dot(a, v[:, sl], preferred_element_type=jnp.float32))
    add = jnp.concatenate(heads, axis=-1)                                # (N1, C)
    add = jnp.dot(add, wmh, preferred_element_type=jnp.float32) + bmh

    cat = jnp.concatenate([m1, add], axis=-1)                            # (N1, 2C)
    hid = jnp.maximum(
        jnp.dot(cat, wc1, preferred_element_type=jnp.float32) + bc1, 0.0)
    out_ref[...] = m1 + (jnp.dot(hid, wc2, preferred_element_type=jnp.float32) + bc2)


# ---------------------------------------------------------------------------
# Kernel 3: feats_weight + LearnableKernel + weighted linear-system assembly
#   fr_ref (M, C), pm_ref (M, Cp) -> equa_left (M, M), w_F (M, C), kernel (M, M)
# ---------------------------------------------------------------------------
def _system_kernel(fr_ref, pm_ref, fs_ref, ft_ref, wfw_ref, bfw_ref,
                   wp_ref, bp_ref, wvk_ref, bvk_ref, lam_ref, beta_ref,
                   eqleft_ref, wf_ref, ker_ref):
    fr = fr_ref[...]                         # (M, C)   feats_repre (channels-last)
    pm = pm_ref[...]                         # (M, Cp)  sampled positions
    M = fr.shape[0]

    # feats_weight: BN(eval, folded) -> ReLU -> Conv(C->1) -> Sigmoid -> clamp
    hw = jnp.maximum(fr * fs_ref[...] + ft_ref[...], 0.0)
    wlog = jnp.sum(hw * wfw_ref[...], axis=-1, keepdims=True) + bfw_ref[...]
    Wf = jnp.clip(jax.nn.sigmoid(wlog), 0.05, 0.95)                      # (M, 1)

    # LearnableKernel (ker_head == 1): pos_filter -> RBF(-beta * d^2)
    pk = jnp.dot(pm, wp_ref[...], preferred_element_type=jnp.float32) + bp_ref[...]
    g = jax.lax.dot_general(pk, pk, (((1,), (1,)), ((), ())),
                            preferred_element_type=jnp.float32)          # (M, M)
    row = jax.lax.broadcasted_iota(jnp.int32, (M, M), 0)
    col = jax.lax.broadcasted_iota(jnp.int32, (M, M), 1)
    eye = (row == col).astype(jnp.float32)
    sq_col = jnp.sum(g * eye, axis=1, keepdims=True)                     # ||p_i||^2
    sq_row = jnp.sum(g * eye, axis=0, keepdims=True)                     # ||p_j||^2
    d2 = jnp.maximum(sq_col + sq_row - 2.0 * g, 0.0)
    ker = jnp.exp(-beta_ref[...] * d2)                                   # (M, M)

    # equation_F = value_filter(feats_repre)^T  (channels-last == (M, C))
    eqf = jnp.dot(fr, wvk_ref[...], preferred_element_type=jnp.float32) + bvk_ref[...]

    w_f = Wf * eqf                                                       # (M, C)
    w_ker = Wf * ker                                                     # row-scaled
    w_ker_w = Wf * jnp.transpose(w_ker)                                  # (M, M)

    eqleft_ref[...] = w_ker_w + lam_ref[...] * eye
    wf_ref[...] = w_f
    ker_ref[...] = ker


# ---------------------------------------------------------------------------
# Kernel 4: tiny batched matmul  pre = kernel @ C_sol
# ---------------------------------------------------------------------------
def _bmm_kernel(a_ref, b_ref, out_ref):
    out_ref[...] = jnp.dot(a_ref[...], b_ref[...],
                           preferred_element_type=jnp.float32)


# ---------------------------------------------------------------------------
# pallas_call wrappers
# ---------------------------------------------------------------------------
def _wspec(shape):
    return pl.BlockSpec(shape, lambda b, _s=shape: (0,) * len(_s))


def _attention_prop(m1, m2, prm, head):
    B, N1, C = m1.shape
    N2 = m2.shape[1]
    C2 = 2 * C
    dh = C // head
    flops = 2 * B * (N1 * C * C + 2 * N2 * C * C + N1 * C * C
                     + 2 * head * N1 * N2 * dh + N1 * C2 * C2 + N1 * C2 * C)
    bytes_acc = 4 * B * (2 * N1 * C + N2 * C) + 4 * (4 * C * C + C2 * C2 + C2 * C)
    return pl.pallas_call(
        functools.partial(_attn_kernel, head=head),
        out_shape=jax.ShapeDtypeStruct((B, N1, C), jnp.float32),
        grid=(B,),
        in_specs=[
            pl.BlockSpec((None, N1, C), lambda b: (b, 0, 0)),
            pl.BlockSpec((None, N2, C), lambda b: (b, 0, 0)),
            _wspec((C, C)), _wspec((1, C)),      # query
            _wspec((C, C)), _wspec((1, C)),      # key
            _wspec((C, C)), _wspec((1, C)),      # value
            _wspec((C, C)), _wspec((1, C)),      # mh_filter
            _wspec((C2, C2)), _wspec((1, C2)),   # cat_filter conv1 (BN folded)
            _wspec((C2, C)), _wspec((1, C)),     # cat_filter conv2
        ],
        out_specs=pl.BlockSpec((None, N1, C), lambda b: (b, 0, 0)),
        compiler_params=pltpu.CompilerParams(dimension_semantics=("parallel",)),
        cost_estimate=pl.CostEstimate(flops=flops,
                                      transcendentals=B * head * N1 * N2,
                                      bytes_accessed=bytes_acc),
    )(m1, m2, prm['wq_t'], prm['bq'], prm['wk_t'], prm['bk'],
      prm['wv_t'], prm['bv'], prm['wmh_t'], prm['bmh'],
      prm['wc1_t'], prm['bc1'], prm['wc2_t'], prm['bc2'])


def dmfc_block_forward(pos_nchw, corr_nchw, kp, head):
    B, C, N, _ = corr_nchw.shape
    Cp = pos_nchw.shape[1]
    M = kp['samp_wc_t'].shape[1]

    corr_cl = jnp.transpose(corr_nchw[..., 0], (0, 2, 1)).astype(jnp.float32)  # (B,N,C)
    pos_cl = jnp.transpose(pos_nchw[..., 0], (0, 2, 1)).astype(jnp.float32)    # (B,N,Cp)

    # Stage 1: AdaptiveSampling -> feats_repre (B,M,C), sampled pos (B,M,Cp)
    fm, pm = pl.pallas_call(
        _sampling_kernel,
        out_shape=(jax.ShapeDtypeStruct((B, M, C), jnp.float32),
                   jax.ShapeDtypeStruct((B, M, Cp), jnp.float32)),
        grid=(B,),
        in_specs=[
            pl.BlockSpec((None, N, C), lambda b: (b, 0, 0)),
            pl.BlockSpec((None, N, Cp), lambda b: (b, 0, 0)),
            _wspec((1, C)), _wspec((1, C)),
            _wspec((C, M)), _wspec((1, M)),
        ],
        out_specs=(pl.BlockSpec((None, M, C), lambda b: (b, 0, 0)),
                   pl.BlockSpec((None, M, Cp), lambda b: (b, 0, 0))),
        compiler_params=pltpu.CompilerParams(dimension_semantics=("parallel",)),
    )(corr_cl, pos_cl, kp['samp_s'], kp['samp_t'], kp['samp_wc_t'], kp['samp_bc'])

    # Stage 2: inject attention (feats_repre attends to corr_feats)
    fr1 = _attention_prop(fm, corr_cl, kp['inject'], head)                      # (B,M,C)

    # Stage 3: weighted RBF linear system (feats_weight + LearnableKernel)
    eqleft, w_f, ker = pl.pallas_call(
        _system_kernel,
        out_shape=(jax.ShapeDtypeStruct((B, M, M), jnp.float32),
                   jax.ShapeDtypeStruct((B, M, C), jnp.float32),
                   jax.ShapeDtypeStruct((B, M, M), jnp.float32)),
        grid=(B,),
        in_specs=[
            pl.BlockSpec((None, M, C), lambda b: (b, 0, 0)),
            pl.BlockSpec((None, M, Cp), lambda b: (b, 0, 0)),
            _wspec((1, C)), _wspec((1, C)),          # feats_weight BN fold
            _wspec((1, C)), _wspec((1, 1)),          # feats_weight conv (C->1)
            _wspec((Cp, Cp)), _wspec((1, Cp)),       # pos_filter
            _wspec((C, C)), _wspec((1, C)),          # value_filter
            _wspec((1, 1)), _wspec((1, 1)),          # lamda, beta
        ],
        out_specs=(pl.BlockSpec((None, M, M), lambda b: (b, 0, 0)),
                   pl.BlockSpec((None, M, C), lambda b: (b, 0, 0)),
                   pl.BlockSpec((None, M, M), lambda b: (b, 0, 0))),
        compiler_params=pltpu.CompilerParams(dimension_semantics=("parallel",)),
    )(fr1, pm, kp['fw_s'], kp['fw_t'], kp['fw_w'], kp['fw_b'],
      kp['wp_t'], kp['bp'], kp['wvk_t'], kp['bvk'], kp['lamda'], kp['beta'])

    # TODO(synk): torch.inverse / batched linear solve has no clean Pallas
    # equivalent; solved with jnp.linalg.solve (XLA) between the kernels.
    c_sol = jnp.linalg.solve(eqleft, w_f)                                       # (B,M,C)

    # Stage 4: pre_feats_repre = kernel @ C   (channels-last of (B, C, M))
    pre = pl.pallas_call(
        _bmm_kernel,
        out_shape=jax.ShapeDtypeStruct((B, M, C), jnp.float32),
        grid=(B,),
        in_specs=[pl.BlockSpec((None, M, M), lambda b: (b, 0, 0)),
                  pl.BlockSpec((None, M, C), lambda b: (b, 0, 0))],
        out_specs=pl.BlockSpec((None, M, C), lambda b: (b, 0, 0)),
        compiler_params=pltpu.CompilerParams(dimension_semantics=("parallel",)),
    )(ker, c_sol)

    # Stage 5/6: rectify1 / rectify attentions
    fr2 = _attention_prop(fr1, pre, kp['rect1'], head)                          # (B,M,C)
    out_cl = _attention_prop(corr_cl, fr2, kp['rect'], head)                    # (B,N,C)

    return jnp.transpose(out_cl, (0, 2, 1))[..., None]                          # (B,C,N,1)


# ---------------------------------------------------------------------------
# Deterministic parameter init (+ eval-mode BN folding for the kernels)
# ---------------------------------------------------------------------------
def init_params(key, channels, num_sampling):
    C, Cp, M = channels, channels // 2, num_sampling

    def uconv(k, o, i):
        kw, kb = jax.random.split(k)
        s = 1.0 / (i ** 0.5)
        return (jax.random.uniform(kw, (o, i), jnp.float32, -s, s),
                jax.random.uniform(kb, (o,), jnp.float32, -s, s))

    def ubn(k, c):
        k1, k2, k3, k4 = jax.random.split(k, 4)
        return dict(g=jax.random.uniform(k1, (c,), jnp.float32, 0.5, 1.5),
                    b=0.1 * jax.random.normal(k2, (c,), jnp.float32),
                    m=0.1 * jax.random.normal(k3, (c,), jnp.float32),
                    v=jax.random.uniform(k4, (c,), jnp.float32, 0.5, 1.5))

    def attn_raw(k):
        ks = jax.random.split(k, 7)
        d = {}
        d['Wq'], d['bq'] = uconv(ks[0], C, C)
        d['Wk'], d['bk'] = uconv(ks[1], C, C)
        d['Wv'], d['bv'] = uconv(ks[2], C, C)
        d['Wmh'], d['bmh'] = uconv(ks[3], C, C)
        d['W1'], d['b1'] = uconv(ks[4], 2 * C, 2 * C)
        d['bn'] = ubn(ks[5], 2 * C)
        d['W2'], d['b2'] = uconv(ks[6], C, 2 * C)
        return d

    keys = jax.random.split(key, 9)
    raw = {}
    raw['samp_bn'] = ubn(keys[0], C)
    raw['Wc'], raw['bc'] = uconv(keys[1], M, C)
    raw['inject'] = attn_raw(keys[2])
    raw['rect1'] = attn_raw(keys[3])
    raw['rect'] = attn_raw(keys[4])
    raw['fw_bn'] = ubn(keys[5], C)
    raw['Wfw'], raw['bfw'] = uconv(keys[6], 1, C)
    raw['Wp'], raw['bp'] = uconv(keys[7], Cp, Cp)
    raw['Wvk'], raw['bvk'] = uconv(keys[8], C, C)
    raw['beta'] = 0.1
    raw['lamda'] = 0.5

    def bn_affine(bn):
        s = bn['g'] / jnp.sqrt(bn['v'] + BN_EPS)
        return s, bn['b'] - bn['m'] * s

    def attn_fold(d):
        scale = d['bn']['g'] / jnp.sqrt(d['bn']['v'] + BN_EPS)
        W1f = d['W1'] * scale[:, None]
        b1f = (d['b1'] - d['bn']['m']) * scale + d['bn']['b']
        return dict(
            wq_t=d['Wq'].T, bq=d['bq'][None, :],
            wk_t=d['Wk'].T, bk=d['bk'][None, :],
            wv_t=d['Wv'].T, bv=d['bv'][None, :],
            wmh_t=d['Wmh'].T, bmh=d['bmh'][None, :],
            wc1_t=W1f.T, bc1=b1f[None, :],
            wc2_t=d['W2'].T, bc2=d['b2'][None, :])

    samp_s, samp_t = bn_affine(raw['samp_bn'])
    fw_s, fw_t = bn_affine(raw['fw_bn'])

    kp = dict(
        samp_s=samp_s[None, :], samp_t=samp_t[None, :],
        samp_wc_t=raw['Wc'].T, samp_bc=raw['bc'][None, :],
        inject=attn_fold(raw['inject']),
        rect1=attn_fold(raw['rect1']),
        rect=attn_fold(raw['rect']),
        fw_s=fw_s[None, :], fw_t=fw_t[None, :],
        fw_w=raw['Wfw'], fw_b=raw['bfw'][None, :],
        wp_t=raw['Wp'].T, bp=raw['bp'][None, :],
        wvk_t=raw['Wvk'].T, bvk=raw['bvk'][None, :],
        lamda=jnp.full((1, 1), raw['lamda'], jnp.float32),
        beta=jnp.full((1, 1), raw['beta'], jnp.float32))
    return raw, kp


# ---------------------------------------------------------------------------
# Pure-JAX reference (mirrors the PyTorch module, NCHW, eval-mode BN)
# ---------------------------------------------------------------------------
def _conv1d(x, W, b):
    return jnp.einsum('oc,bcn->bon', W, x) + b[None, :, None]


def _bn1d_eval(x, bn):
    s = bn['g'] / jnp.sqrt(bn['v'] + BN_EPS)
    return (x - bn['m'][None, :, None]) * s[None, :, None] + bn['b'][None, :, None]


def _attn_prop_ref(m1, m2, d, head):
    B, C, N1 = m1.shape
    N2 = m2.shape[2]
    dh = C // head
    q = _conv1d(m1, d['Wq'], d['bq']).reshape(B, head, dh, N1)
    k = _conv1d(m2, d['Wk'], d['bk']).reshape(B, head, dh, N2)
    v = _conv1d(m2, d['Wv'], d['bv']).reshape(B, head, dh, N2)
    score = jnp.einsum('bhdn,bhdm->bhnm', q, k) / (dh ** 0.5)
    attn = jax.nn.softmax(score, axis=-1)
    add = jnp.einsum('bhnm,bhdm->bhdn', attn, v).reshape(B, C, N1)
    add = _conv1d(add, d['Wmh'], d['bmh'])
    cat = jnp.concatenate([m1, add], axis=1)
    h = jax.nn.relu(_bn1d_eval(_conv1d(cat, d['W1'], d['b1']), d['bn']))
    return m1 + _conv1d(h, d['W2'], d['b2'])


def dmfc_block_reference(pos_nchw, corr_nchw, raw, head):
    corr = corr_nchw[..., 0]                          # (B, C, N)
    pos = pos_nchw[..., 0]                            # (B, Cp, N)

    # AdaptiveSampling
    F4 = corr[..., None]
    mu = jnp.mean(F4, axis=(2, 3), keepdims=True)
    var = jnp.var(F4, axis=(2, 3), keepdims=True)
    xin = (F4 - mu) / jnp.sqrt(var + IN_EPS)
    bn = raw['samp_bn']
    s = bn['g'] / jnp.sqrt(bn['v'] + BN_EPS)
    xbn = ((xin - bn['m'][None, :, None, None]) * s[None, :, None, None]
           + bn['b'][None, :, None, None])
    xr = jax.nn.relu(xbn)
    wts = jnp.einsum('mc,bcnk->bmnk', raw['Wc'], xr) + raw['bc'][None, :, None, None]
    W = jax.nn.softmax(wts, axis=2)[..., 0]           # (B, M, N)
    feats_repre = jnp.einsum('bcn,bmn->bcm', corr, W)
    pos_m = jnp.einsum('bpn,bmn->bpm', pos, W)

    feats_repre = _attn_prop_ref(feats_repre, corr, raw['inject'], head)

    fw = jax.nn.relu(_bn1d_eval(feats_repre, raw['fw_bn']))
    wlog = _conv1d(fw, raw['Wfw'], raw['bfw'])        # (B, 1, M)
    Wf = jnp.clip(jax.nn.sigmoid(wlog).transpose(0, 2, 1), 0.05, 0.95)

    posf = _conv1d(pos_m, raw['Wp'], raw['bp'])
    pT = posf.transpose(0, 2, 1)                      # (B, M, Cp)
    sq = jnp.sum(pT * pT, axis=-1)
    d2 = jnp.maximum(sq[:, :, None] + sq[:, None, :]
                     - 2.0 * jnp.einsum('bmd,bnd->bmn', pT, pT), 0.0)
    ker = jnp.exp(-(jnp.sqrt(d2) ** 2) * raw['beta'])
    eqF = _conv1d(feats_repre, raw['Wvk'], raw['bvk']).transpose(0, 2, 1)

    wF = Wf * eqF
    wK = Wf * ker
    wKw = Wf * wK.transpose(0, 2, 1)
    eye = jnp.eye(ker.shape[1], dtype=jnp.float32)
    equa_left = wKw + raw['lamda'] * eye
    Csol = jnp.einsum('bij,bjc->bic', jnp.linalg.inv(equa_left), wF)
    pre = jnp.einsum('bij,bjc->bic', ker, Csol).transpose(0, 2, 1)

    pre = _attn_prop_ref(feats_repre, pre, raw['rect1'], head)
    out = _attn_prop_ref(corr, pre, raw['rect'], head)
    return out[..., None]


if __name__ == "__main__":
    B, channels, N = 2, 32, 64
    num_sampling, head = 16, 4            # ker_head == 1 (required by LearnableKernel's squeeze)
    Cp = channels // 2

    key = jax.random.PRNGKey(0)
    k_pos, k_feat, k_par = jax.random.split(key, 3)
    pos = jax.random.normal(k_pos, (B, Cp, N, 1), jnp.float32)
    corr_feats = jax.random.normal(k_feat, (B, channels, N, 1), jnp.float32)
    raw, kp = init_params(k_par, channels, num_sampling)

    out = dmfc_block_forward(pos, corr_feats, kp, head)
    out = jax.block_until_ready(out)
    assert out.shape == (B, channels, N, 1), out.shape

    ref = dmfc_block_reference(pos, corr_feats, raw, head)
    err = float(jnp.max(jnp.abs(out - ref)))
    assert jnp.allclose(out, ref, atol=1e-2, rtol=1e-2), f"max abs err {err}"

    print("KERNEL_OK")
</pallas_src>

<mosaic_0001>
module attributes {stable_mosaic.version = 11 : i64} {
  func.func @_sampling_kernel(%arg0: i32, %arg1: memref<1x64x32xf32, #tpu.memory_space<vmem>>, %arg2: memref<1x64x16xf32, #tpu.memory_space<vmem>>, %arg3: memref<1x32xf32, #tpu.memory_space<vmem>>, %arg4: memref<1x32xf32, #tpu.memory_space<vmem>>, %arg5: memref<32x16xf32, #tpu.memory_space<vmem>>, %arg6: memref<1x16xf32, #tpu.memory_space<vmem>>, %arg7: memref<1x16x32xf32, #tpu.memory_space<vmem>>, %arg8: memref<1x16x16xf32, #tpu.memory_space<vmem>>) attributes {dimension_semantics = [#tpu.dimension_semantics<parallel>], iteration_bounds = array<i64: 2>, scalar_prefetch = 0 : i64, scratch_operands = 0 : i64, tpu.core_type = #tpu.core_type<tc>, window_params = [{transform_indices = @transform_0, window_bounds = array<i64: 1, 64, 32>}, {transform_indices = @transform_1, window_bounds = array<i64: 1, 64, 16>}, {pipeline_mode = #tpu.pipeline_mode<synchronous>, transform_indices = @transform_2, window_bounds = array<i64: 1, 32>}, {pipeline_mode = #tpu.pipeline_mode<synchronous>, transform_indices = @transform_3, window_bounds = array<i64: 1, 32>}, {pipeline_mode = #tpu.pipeline_mode<synchronous>, transform_indices = @transform_4, window_bounds = array<i64: 32, 16>}, {pipeline_mode = #tpu.pipeline_mode<synchronous>, transform_indices = @transform_5, window_bounds = array<i64: 1, 16>}, {transform_indices = @transform_6, window_bounds = array<i64: 1, 16, 32>}, {transform_indices = @transform_7, window_bounds = array<i64: 1, 16, 16>}]} {
    %c0 = arith.constant 0 : index
    %c0_0 = arith.constant 0 : index
    %c0_1 = arith.constant 0 : index
    %0 = vector.load %arg1[%c0, %c0_0, %c0_1] : memref<1x64x32xf32, #tpu.memory_space<vmem>>, vector<1x64x32xf32>
    %1 = vector.shape_cast %0 : vector<1x64x32xf32> to vector<64x32xf32>
    %c0_2 = arith.constant 0 : index
    %c0_3 = arith.constant 0 : index
    %c0_4 = arith.constant 0 : index
    %2 = vector.load %arg2[%c0_2, %c0_3, %c0_4] : memref<1x64x16xf32, #tpu.memory_space<vmem>>, vector<1x64x16xf32>
    %3 = vector.shape_cast %2 : vector<1x64x16xf32> to vector<64x16xf32>
    %c0_5 = arith.constant 0 : index
    %c0_6 = arith.constant 0 : index
    %4 = vector.load %arg3[%c0_5, %c0_6] : memref<1x32xf32, #tpu.memory_space<vmem>>, vector<1x32xf32>
    %c0_7 = arith.constant 0 : index
    %c0_8 = arith.constant 0 : index
    %5 = vector.load %arg4[%c0_7, %c0_8] : memref<1x32xf32, #tpu.memory_space<vmem>>, vector<1x32xf32>
    %c0_9 = arith.constant 0 : index
    %c0_10 = arith.constant 0 : index
    %6 = vector.load %arg5[%c0_9, %c0_10] : memref<32x16xf32, #tpu.memory_space<vmem>>, vector<32x16xf32>
    %c0_11 = arith.constant 0 : index
    %c0_12 = arith.constant 0 : index
    %7 = vector.load %arg6[%c0_11, %c0_12] : memref<1x16xf32, #tpu.memory_space<vmem>>, vector<1x16xf32>
    %cst = arith.constant dense<0.000000e+00> : vector<32xf32>
    %8 = vector.multi_reduction <add>, %1, %cst [0] : vector<64x32xf32> to vector<32xf32>
    %9 = vector.shape_cast %8 : vector<32xf32> to vector<1x32xf32>
    %cst_13 = arith.constant 6.400000e+01 : f32
    %10 = vector.broadcast %cst_13 : f32 to vector<1x32xf32>
    %11 = arith.divf %9, %10 : vector<1x32xf32>
    %12 = vector.broadcast %11 : vector<1x32xf32> to vector<64x32xf32>
    %13 = arith.subf %1, %12 : vector<64x32xf32>
    %14 = arith.mulf %13, %13 : vector<64x32xf32>
    %cst_14 = arith.constant dense<0.000000e+00> : vector<32xf32>
    %15 = vector.multi_reduction <add>, %14, %cst_14 [0] : vector<64x32xf32> to vector<32xf32>
    %16 = vector.shape_cast %15 : vector<32xf32> to vector<1x32xf32>
    %cst_15 = arith.constant 6.400000e+01 : f32
    %17 = vector.broadcast %cst_15 : f32 to vector<1x32xf32>
    %18 = arith.divf %16, %17 : vector<1x32xf32>
    %19 = vector.broadcast %11 : vector<1x32xf32> to vector<64x32xf32>
    %20 = arith.subf %1, %19 : vector<64x32xf32>
    %cst_16 = arith.constant 1.000000e-03 : f32
    %21 = vector.broadcast %cst_16 : f32 to vector<1x32xf32>
    %22 = arith.addf %18, %21 : vector<1x32xf32>
    %23 = math.rsqrt %22 : vector<1x32xf32>
    %24 = vector.broadcast %23 : vector<1x32xf32> to vector<64x32xf32>
    %25 = arith.mulf %20, %24 : vector<64x32xf32>
    %26 = vector.broadcast %4 : vector<1x32xf32> to vector<64x32xf32>
    %27 = arith.mulf %25, %26 : vector<64x32xf32>
    %28 = vector.broadcast %5 : vector<1x32xf32> to vector<64x32xf32>
    %29 = arith.addf %27, %28 : vector<64x32xf32>
    %cst_17 = arith.constant 0.000000e+00 : f32
    %30 = vector.broadcast %cst_17 : f32 to vector<64x32xf32>
    %31 = arith.maximumf %29, %30 : vector<64x32xf32>
    %cst_18 = arith.constant dense<0.000000e+00> : vector<64x16xf32>
    %32 = tpu.matmul %31, %6, %cst_18 {dimension_numbers = #tpu.dot_dimension_numbers<[1], [0], [0], [1], [0, 0, 1, 1], [], []>} : vector<64x32xf32>, vector<32x16xf32>, vector<64x16xf32> -> vector<64x16xf32>
    %33 = vector.broadcast %7 : vector<1x16xf32> to vector<64x16xf32>
    %34 = arith.addf %32, %33 : vector<64x16xf32>
    %cst_19 = arith.constant dense<0xFF800000> : vector<16xf32>
    %35 = vector.multi_reduction <maximumf>, %34, %cst_19 [0] : vector<64x16xf32> to vector<16xf32>
    %36 = vector.shape_cast %35 : vector<16xf32> to vector<1x16xf32>
    %37 = vector.broadcast %36 : vector<1x16xf32> to vector<64x16xf32>
    %38 = arith.subf %34, %37 : vector<64x16xf32>
    %39 = math.exp %38 : vector<64x16xf32>
    %cst_20 = arith.constant dense<0.000000e+00> : vector<16xf32>
    %40 = vector.multi_reduction <add>, %39, %cst_20 [0] : vector<64x16xf32> to vector<16xf32>
    %41 = vector.shape_cast %40 : vector<16xf32> to vector<1x16xf32>
    %42 = vector.broadcast %41 : vector<1x16xf32> to vector<64x16xf32>
    %43 = arith.divf %39, %42 : vector<64x16xf32>
    %cst_21 = arith.constant dense<0.000000e+00> : vector<16x32xf32>
    %44 = tpu.matmul %43, %1, %cst_21 {dimension_numbers = #tpu.dot_dimension_numbers<[0], [0], [1], [1], [0, 1, 1, 1], [], []>} : vector<64x16xf32>, vector<64x32xf32>, vector<16x32xf32> -> vector<16x32xf32>
    %c0_22 = arith.constant 0 : index
    %c0_23 = arith.constant 0 : index
    %c0_24 = arith.constant 0 : index
    %45 = vector.load %arg7[%c0_22, %c0_23, %c0_24] : memref<1x16x32xf32, #tpu.memory_space<vmem>>, vector<1x16x32xf32>
    %46 = vector.shape_cast %45 : vector<1x16x32xf32> to vector<16x32xf32>
    %47 = vector.shape_cast %44 : vector<16x32xf32> to vector<1x16x32xf32>
    tpu.vector_store %arg7[%c0_22, %c0_23, %c0_24], %47 {strides = array<i32>} : memref<1x16x32xf32, #tpu.memory_space<vmem>>, vector<1x16x32xf32>,
    %cst_25 = arith.constant dense<0.000000e+00> : vector<16x16xf32>
    %48 = tpu.matmul %43, %3, %cst_25 {dimension_numbers = #tpu.dot_dimension_numbers<[0], [0], [1], [1], [0, 1, 1, 1], [], []>} : vector<64x16xf32>, vector<64x16xf32>, vector<16x16xf32> -> vector<16x16xf32>
    %c0_26 = arith.constant 0 : index
    %c0_27 = arith.constant 0 : index
    %c0_28 = arith.constant 0 : index
    %49 = vector.load %arg8[%c0_26, %c0_27, %c0_28] : memref<1x16x16xf32, #tpu.memory_space<vmem>>, vector<1x16x16xf32>
    %50 = vector.shape_cast %49 : vector<1x16x16xf32> to vector<16x16xf32>
    %51 = vector.shape_cast %48 : vector<16x16xf32> to vector<1x16x16xf32>
    tpu.vector_store %arg8[%c0_26, %c0_27, %c0_28], %51 {strides = array<i32>} : memref<1x16x16xf32, #tpu.memory_space<vmem>>, vector<1x16x16xf32>,
    return
  }
  func.func @transform_0(%arg0: i32) -> (i32, i32, i32) {
    %c0_i32 = arith.constant 0 : i32
    %c0_i32_0 = arith.constant 0 : i32
    %c0_i32_1 = arith.constant 0 : i32
    return %arg0, %c0_i32, %c0_i32_0 : i32, i32, i32
  }
  func.func @transform_1(%arg0: i32) -> (i32, i32, i32) {
    %c0_i32 = arith.constant 0 : i32
    %c0_i32_0 = arith.constant 0 : i32
    %c0_i32_1 = arith.constant 0 : i32
    return %arg0, %c0_i32, %c0_i32_0 : i32, i32, i32
  }
  func.func @transform_2(%arg0: i32) -> (i32, i32) {
    %c0_i32 = arith.constant 0 : i32
    %c0_i32_0 = arith.constant 0 : i32
    %c0_i32_1 = arith.constant 0 : i32
    return %c0_i32, %c0_i32_0 : i32, i32
  }
  func.func @transform_3(%arg0: i32) -> (i32, i32) {
    %c0_i32 = arith.constant 0 : i32
    %c0_i32_0 = arith.constant 0 : i32
    %c0_i32_1 = arith.constant 0 : i32
    return %c0_i32, %c0_i32_0 : i32, i32
  }
  func.func @transform_4(%arg0: i32) -> (i32, i32) {
    %c0_i32 = arith.constant 0 : i32
    %c0_i32_0 = arith.constant 0 : i32
    %c0_i32_1 = arith.constant 0 : i32
    return %c0_i32, %c0_i32_0 : i32, i32
  }
  func.func @transform_5(%arg0: i32) -> (i32, i32) {
    %c0_i32 = arith.constant 0 : i32
    %c0_i32_0 = arith.constant 0 : i32
    %c0_i32_1 = arith.constant 0 : i32
    return %c0_i32, %c0_i32_0 : i32, i32
  }
  func.func @transform_6(%arg0: i32) -> (i32, i32, i32) {
    %c0_i32 = arith.constant 0 : i32
    %c0_i32_0 = arith.constant 0 : i32
    %c0_i32_1 = arith.constant 0 : i32
    return %arg0, %c0_i32, %c0_i32_0 : i32, i32, i32
  }
  func.func @transform_7(%arg0: i32) -> (i32, i32, i32) {
    %c0_i32 = arith.constant 0 : i32
    %c0_i32_0 = arith.constant 0 : i32
    %c0_i32_1 = arith.constant 0 : i32
    return %arg0, %c0_i32, %c0_i32_0 : i32, i32, i32
  }
}

</mosaic_0001>

<llo_original>
// kernel: tpu_custom_call.1
$region0: #{tpu_custom_call.1}
  #allocation0 [shape = 'u32[]', space=smem, size = 0x4, offset = 0x4, fixed_abs, tag = 'smem constant byte address 0x4 - core index']
  #allocation1 [shape = 'u32[144,128]{1,0:T(1,128)}', space=vmem, size = 0x12000, scoped, tag = 'internal scratch']
  %s0 = inlined_call_operand.vmem [shape: f32[2,64,32], index: 0, kind: input, shape index: {}]
  %s1 = inlined_call_operand.vmem [shape: f32[2,64,16], index: 1, kind: input, shape index: {}]
  %s2 = inlined_call_operand.vmem [shape: f32[1,32], index: 2, kind: input, shape index: {}]
  %s3 = inlined_call_operand.vmem [shape: f32[1,32], index: 3, kind: input, shape index: {}]
  %s4 = inlined_call_operand.vmem [shape: f32[32,16], index: 4, kind: input, shape index: {}]
  %s5 = inlined_call_operand.vmem [shape: f32[1,16], index: 5, kind: input, shape index: {}]
  %s6 = inlined_call_operand.hbm [shape: f32[2,16,32], index: 6, kind: output, shape index: {0}]
  %s7 = inlined_call_operand.hbm [shape: f32[2,16,16], index: 7, kind: output, shape index: {1}]
  %8 = xla_tuple %s6, %s7
  %s9 = sld [smem:[#allocation0]]
  $region65: #{tpu_custom_call.1} parent=0
    _
  %s11 = ssub.s32 1, %s9
  %s12 = scalar_select 0, %s11, %s9
  $region1: #{tpu_custom_call.1} parent=0
    #allocation2 [shape = 'u8[16384]{0}', space=vmem, size = 0x4000, scoped, tag = 'output window, operand 0']
    #allocation3 [shape = 's32[2]{0}', space=sflag, size = 0x8, scoped, tag = 'scoped memory for tpu_custom_call.1']
    #allocation4 [shape = 'u8[16384]{0}', space=vmem, size = 0x4000, scoped, tag = 'output window, operand 1']
    #allocation5 [shape = 's32[2]{0}', space=sflag, size = 0x8, scoped, tag = 'scoped memory for tpu_custom_call.1']
    %13 = vsyncpa [#allocation3], 0
    %s14 = scalar_lea.sflag [#allocation3], 1
    %15 = vsyncpa %s14, 0
    %16 = vsyncpa [#allocation5], 0
    %s17 = scalar_lea.sflag [#allocation5], 1
    %18 = vsyncpa %s17, 0
    loop: start=0, step=1, limit=4
    $region2: #{tpu_custom_call.1} parent=1 // loop_pre_header
      _
    $region3: #{tpu_custom_call.1} parent=1 // loop_header
      %s20 = sphi 0, %s24
      %p21 = scmp.ge.s32.totalorder %s20, 4
      %s30 = sphi 0, %s32
      %s33 = sphi 0, %s30
      %s34 = sphi 0, %s33
      %s50 = sphi 0, %s34
      %s56 = sphi 0, %s58
      %s59 = sphi 0, %s56
      %s60 = sphi 0, %s59
      %s76 = sphi 0, %s60
      %s80 = sphi 0, %s80
      %s82 = sphi 0, %s80
      %s83 = sphi 0, %s82
      %s97 = sphi 0, %s83
      %s101 = sphi 0, %s101
      %s103 = sphi 0, %s101
      %s104 = sphi 0, %s103
      %s118 = sphi 0, %s104
      %s122 = sphi 0, %s122
      %s124 = sphi 0, %s122
      %s125 = sphi 0, %s124
      %s139 = sphi 0, %s125
      %s143 = sphi 0, %s143
      %s145 = sphi 0, %s143
      %s146 = sphi 0, %s145
      %s160 = sphi 0, %s146
      %s166 = sphi 0, %s168
      %s169 = sphi 0, %s166
      %s170 = sphi 0, %s169
      %s186 = sphi 0, %s170
      %s192 = sphi 0, %s194
      %s195 = sphi 0, %s192
      %s196 = sphi 0, %s195
      %s212 = sphi 0, %s196
    $region4: #{tpu_custom_call.1} parent=1 // loop_header_branch
      %23 = sbr.rel (%p21) target = $region8
    $region5: #{tpu_custom_call.1} parent=1 // loop_body
      %s25 = ssub.s32 %s20, 1
      %s26 = ssub.s32 %s20, 2
      %s27 = sadd.s32 %s20, 1
      %s28 = ssub.s32 %s20, %s27
      %p29 = scmp.eq.s32.totalorder %s28, 0
      %s31 = sadd.s32 %s30, 1
      %s32 = scalar_select %p29, %s30, %s31
      %p35 = pneg %p29
      %p36 = scmp.eq.s32.totalorder %s20, 1
      %p37 = por %p35, %p36
      %p38 = scmp.ne.s32.totalorder %s30, %s33
      %p39 = scmp.eq.s32.totalorder %s20, 0
      %p40 = por %p38, %p39
      %p41 = scmp.ne.s32.totalorder %s30, %s33
      %p42 = scmp.eq.s32.totalorder %s25, 1
      %p43 = por %p41, %p42
      %p44 = scmp.ne.s32.totalorder %s33, %s34
      %p45 = scmp.eq.s32.totalorder %s25, 0
      %p46 = por %p44, %p45
      %p47 = scmp.ne.s32.totalorder %s33, %s34
      %p48 = scmp.eq.s32.totalorder %s26, 1
      %p49 = por %p47, %p48
      %p51 = scmp.ne.s32.totalorder %s34, %s50
      %p52 = scmp.eq.s32.totalorder %s26, 0
      %p53 = por %p51, %p52
      %s54 = ssub.s32 %s20, %s27
      %p55 = scmp.eq.s32.totalorder %s54, 0
      %s57 = sadd.s32 %s56, 1
      %s58 = scalar_select %p55, %s56, %s57
      %p61 = pneg %p55
      %p62 = scmp.eq.s32.totalorder %s20, 1
      %p63 = por %p61, %p62
      %p64 = scmp.ne.s32.totalorder %s56, %s59
      %p65 = scmp.eq.s32.totalorder %s20, 0
      %p66 = por %p64, %p65
      %p67 = scmp.ne.s32.totalorder %s56, %s59
      %p68 = scmp.eq.s32.totalorder %s25, 1
      %p69 = por %p67, %p68
      %p70 = scmp.ne.s32.totalorder %s59, %s60
      %p71 = scmp.eq.s32.totalorder %s25, 0
      %p72 = por %p70, %p71
      %p73 = scmp.ne.s32.totalorder %s59, %s60
      %p74 = scmp.eq.s32.totalorder %s26, 1
      %p75 = por %p73, %p74
      %p77 = scmp.ne.s32.totalorder %s60, %s76
      %p78 = scmp.eq.s32.totalorder %s26, 0
      %p79 = por %p77, %p78
      %s81 = sadd.s32 %s80, 1
      %p84 = scmp.eq.s32.totalorder %s20, 1
      %p85 = scmp.ne.s32.totalorder %s80, %s82
      %p86 = scmp.eq.s32.totalorder %s20, 0
      %p87 = por %p85, %p86
      %p88 = scmp.ne.s32.totalorder %s80, %s82
      %p89 = scmp.eq.s32.totalorder %s25, 1
      %p90 = por %p88, %p89
      %p91 = scmp.ne.s32.totalorder %s82, %s83
      %p92 = scmp.eq.s32.totalorder %s25, 0
      %p93 = por %p91, %p92
      %p94 = scmp.ne.s32.totalorder %s82, %s83
      %p95 = scmp.eq.s32.totalorder %s26, 1
      %p96 = por %p94, %p95
      %p98 = scmp.ne.s32.totalorder %s83, %s97
      %p99 = scmp.eq.s32.totalorder %s26, 0
      %p100 = por %p98, %p99
      %s102 = sadd.s32 %s101, 1
      %p105 = scmp.eq.s32.totalorder %s20, 1
      %p106 = scmp.ne.s32.totalorder %s101, %s103
      %p107 = scmp.eq.s32.totalorder %s20, 0
      %p108 = por %p106, %p107
      %p109 = scmp.ne.s32.totalorder %s101, %s103
      %p110 = scmp.eq.s32.totalorder %s25, 1
      %p111 = por %p109, %p110
      %p112 = scmp.ne.s32.totalorder %s103, %s104
      %p113 = scmp.eq.s32.totalorder %s25, 0
      %p114 = por %p112, %p113
      %p115 = scmp.ne.s32.totalorder %s103, %s104
      %p116 = scmp.eq.s32.totalorder %s26, 1
      %p117 = por %p115, %p116
      %p119 = scmp.ne.s32.totalorder %s104, %s118
      %p120 = scmp.eq.s32.totalorder %s26, 0
      %p121 = por %p119, %p120
      %s123 = sadd.s32 %s122, 1
      %p126 = scmp.eq.s32.totalorder %s20, 1
      %p127 = scmp.ne.s32.totalorder %s122, %s124
      %p128 = scmp.eq.s32.totalorder %s20, 0
      %p129 = por %p127, %p128
      %p130 = scmp.ne.s32.totalorder %s122, %s124
      %p131 = scmp.eq.s32.totalorder %s25, 1
      %p132 = por %p130, %p131
      %p133 = scmp.ne.s32.totalorder %s124, %s125
      %p134 = scmp.eq.s32.totalorder %s25, 0
      %p135 = por %p133, %p134
      %p136 = scmp.ne.s32.totalorder %s124, %s125
      %p137 = scmp.eq.s32.totalorder %s26, 1
      %p138 = por %p136, %p137
      %p140 = scmp.ne.s32.totalorder %s125, %s139
      %p141 = scmp.eq.s32.totalorder %s26, 0
      %p142 = por %p140, %p141
      %s144 = sadd.s32 %s143, 1
      %p147 = scmp.eq.s32.totalorder %s20, 1
      %p148 = scmp.ne.s32.totalorder %s143, %s145
      %p149 = scmp.eq.s32.totalorder %s20, 0
      %p150 = por %p148, %p149
      %p151 = scmp.ne.s32.totalorder %s143, %s145
      %p152 = scmp.eq.s32.totalorder %s25, 1
      %p153 = por %p151, %p152
      %p154 = scmp.ne.s32.totalorder %s145, %s146
      %p155 = scmp.eq.s32.totalorder %s25, 0
      %p156 = por %p154, %p155
      %p157 = scmp.ne.s32.totalorder %s145, %s146
      %p158 = scmp.eq.s32.totalorder %s26, 1
      %p159 = por %p157, %p158
      %p161 = scmp.ne.s32.totalorder %s146, %s160
      %p162 = scmp.eq.s32.totalorder %s26, 0
      %p163 = por %p161, %p162
      %s164 = ssub.s32 %s20, %s27
      %p165 = scmp.eq.s32.totalorder %s164, 0
      %s167 = sadd.s32 %s166, 1
      %s168 = scalar_select %p165, %s166, %s167
      %p171 = pneg %p165
      %p172 = scmp.eq.s32.totalorder %s20, 1
      %p173 = por %p171, %p172
      %p174 = scmp.ne.s32.totalorder %s166, %s169
      %p175 = scmp.eq.s32.totalorder %s20, 0
      %p176 = por %p174, %p175
      %p177 = scmp.ne.s32.totalorder %s166, %s169
      %p178 = scmp.eq.s32.totalorder %s25, 1
      %p179 = por %p177, %p178
      %p180 = scmp.ne.s32.totalorder %s169, %s170
      %p181 = scmp.eq.s32.totalorder %s25, 0
      %p182 = por %p180, %p181
      %p183 = scmp.ne.s32.totalorder %s169, %s170
      %p184 = scmp.eq.s32.totalorder %s26, 1
      %p185 = por %p183, %p184
      %p187 = scmp.ne.s32.totalorder %s170, %s186
      %p188 = scmp.eq.s32.totalorder %s26, 0
      %p189 = por %p187, %p188
      %s190 = ssub.s32 %s20, %s27
      %p191 = scmp.eq.s32.totalorder %s190, 0
      %s193 = sadd.s32 %s192, 1
      %s194 = scalar_select %p191, %s192, %s193
      %p197 = pneg %p191
      %p198 = scmp.eq.s32.totalorder %s20, 1
      %p199 = por %p197, %p198
      %p200 = scmp.ne.s32.totalorder %s192, %s195
      %p201 = scmp.eq.s32.totalorder %s20, 0
      %p202 = por %p200, %p201
      %p203 = scmp.ne.s32.totalorder %s192, %s195
      %p204 = scmp.eq.s32.totalorder %s25, 1
      %p205 = por %p203, %p204
      %p206 = scmp.ne.s32.totalorder %s195, %s196
      %p207 = scmp.eq.s32.totalorder %s25, 0
      %p208 = por %p206, %p207
      %p209 = scmp.ne.s32.totalorder %s195, %s196
      %p210 = scmp.eq.s32.totalorder %s26, 1
      %p211 = por %p209, %p210
      %p213 = scmp.ne.s32.totalorder %s196, %s212
      %p214 = scmp.eq.s32.totalorder %s26, 0
      %p215 = por %p213, %p214
      %p216 = scmp.le.s32.totalorder 1, %s20
      %p217 = scmp.lt.s32.totalorder %s20, 3
      %p218 = pnand %p216, %p217
      %p219 = pneg %p218
      // Predicated region
      $region9: #{tpu_custom_call.1} parent=5 // pred_check
        _
      $region10: #{tpu_custom_call.1} parent=5 // pred_check_branch
        %221 = sbr.rel (%p218) target = $region12
      $region11: #{tpu_custom_call.1} parent=5 // pred_region
        %s222 = ssub.s32 %s20, 1
        // Predicated region
        $region13: #{tpu_custom_call.1} parent=11 // pred_check
          %p223 = pneg %p93
        $region14: #{tpu_custom_call.1} parent=11 // pred_check_branch
          %225 = sbr.rel (%p223) target = $region16
        $region15: #{tpu_custom_call.1} parent=11 // pred_region
          _
        $region16: #{tpu_custom_call.1} parent=11 // pred_fallthru
          _
        // Predicated region
        $region17: #{tpu_custom_call.1} parent=11 // pred_check
          %p226 = pneg %p114
        $region18: #{tpu_custom_call.1} parent=11 // pred_check_branch
          %228 = sbr.rel (%p226) target = $region20
        $region19: #{tpu_custom_call.1} parent=11 // pred_region
          _
        $region20: #{tpu_custom_call.1} parent=11 // pred_fallthru
          _
        // Predicated region
        $region21: #{tpu_custom_call.1} parent=11 // pred_check
          %p229 = pneg %p135
        $region22: #{tpu_custom_call.1} parent=11 // pred_check_branch
          %231 = sbr.rel (%p229) target = $region24
        $region23: #{tpu_custom_call.1} parent=11 // pred_region
          _
        $region24: #{tpu_custom_call.1} parent=11 // pred_fallthru
          _
        // Predicated region
        $region25: #{tpu_custom_call.1} parent=11 // pred_check
          %p232 = pneg %p156
        $region26: #{tpu_custom_call.1} parent=11 // pred_check_branch
          %234 = sbr.rel (%p232) target = $region28
        $region27: #{tpu_custom_call.1} parent=11 // pred_region
          _
        $region28: #{tpu_custom_call.1} parent=11 // pred_fallthru
          _
      $region12: #{tpu_custom_call.1} parent=5 // pred_fallthru
        _
      %p235 = scmp.lt.s32.totalorder %s20, 2
      // Predicated region
      $region29: #{tpu_custom_call.1} parent=5 // pred_check
        %p236 = pneg %p235
      $region30: #{tpu_custom_call.1} parent=5 // pred_check_branch
        %238 = sbr.rel (%p236) target = $region32
      $region31: #{tpu_custom_call.1} parent=5 // pred_region
        // Predicated region
        $region33: #{tpu_custom_call.1} parent=31 // pred_check
          %p239 = pneg %p40
        $region34: #{tpu_custom_call.1} parent=31 // pred_check_branch
          %241 = sbr.rel (%p239) target = $region36
        $region35: #{tpu_custom_call.1} parent=31 // pred_region
          %p242 = scmp.lt.s32.totalorder %s20, 1
          %s243 = scalar_select %p242, %s20, 1
          %s244 = smul.addr %s243, 8
          %s245 = smul.addr %s244, 8
          %s246 = scalar_lea.vmem %s0, %s245
        $region36: #{tpu_custom_call.1} parent=31 // pred_fallthru
          _
        // Predicated region
        $region37: #{tpu_custom_call.1} parent=31 // pred_check
          %p247 = pneg %p66
        $region38: #{tpu_custom_call.1} parent=31 // pred_check_branch
          %249 = sbr.rel (%p247) target = $region40
        $region39: #{tpu_custom_call.1} parent=31 // pred_region
          %p250 = scmp.lt.s32.totalorder %s20, 1
          %s251 = scalar_select %p250, %s20, 1
          %s252 = smul.addr %s251, 8
          %s253 = smul.addr %s252, 8
          %s254 = scalar_lea.vmem %s1, %s253
        $region40: #{tpu_custom_call.1} parent=31 // pred_fallthru
          _
      $region32: #{tpu_custom_call.1} parent=5 // pred_fallthru
        _
      %p255 = scmp.le.s32.totalorder 1, %s20
      %p256 = scmp.lt.s32.totalorder %s20, 3
      %p257 = pnand %p255, %p256
      %p258 = pneg %p257
      // Predicated region
      $region41: #{tpu_custom_call.1} parent=5 // pred_check
        _
      $region42: #{tpu_custom_call.1} parent=5 // pred_check_branch
        %260 = sbr.rel (%p257) target = $region44
      $region43: #{tpu_custom_call.1} parent=5 // pred_region
        %s261 = ssub.s32 %s20, 1
        %p262 = scmp.lt.s32.totalorder %s25, 1
        %s263 = scalar_select %p262, %s25, 1
        %s264 = smul.addr %s263, 8
        %s265 = smul.addr %s264, 8
        %s266 = scalar_lea.vmem %s0, %s265
        %p267 = pneg %p46
        %p268 = pneg %p43
        %p269 = scmp.lt.s32.totalorder %s25, 1
        %s270 = scalar_select %p269, %s25, 1
        %s271 = smul.addr %s270, 8
        %s272 = smul.addr %s271, 8
        %s273 = scalar_lea.vmem %s1, %s272
        %p274 = pneg %p72
        %p275 = pneg %p69
        %p276 = pneg %p93
        %p277 = pneg %p90
        %p278 = pneg %p114
        %p279 = pneg %p111
        %p280 = pneg %p135
        %p281 = pneg %p132
        %p282 = pneg %p156
        %p283 = pneg %p153
        %p284 = pneg %p182
        %p285 = pneg %p179
        %s286 = sand.u32 %s169, 1
        %s287 = scalar_lea.sflag [#allocation3], %s286
        %s288 = sand.u32 %s169, 1
        %s289 = smul.addr %s288, 16
        %s290 = scalar_lea.vmem [#allocation2], %s289
        %p291 = pneg %p208
        %p292 = pneg %p205
        %s293 = sand.u32 %s195, 1
        %s294 = scalar_lea.sflag [#allocation5], %s293
        %s295 = sand.u32 %s195, 1
        %s296 = smul.addr %s295, 16
        %s297 = scalar_lea.vmem [#allocation4], %s296
        %p298 = scmp.lt.s32.totalorder %s25, 1
        %s299 = scalar_select %p298, %s25, 1
        %s300 = smul.addr %s299, 8
        %s301 = smul.addr %s300, 8
        %s302 = scalar_lea.vmem %s0, %s301
        %p303 = scmp.lt.s32.totalorder %s25, 1
        %s304 = scalar_select %p303, %s25, 1
        %s305 = smul.addr %s304, 8
        %s306 = smul.addr %s305, 8
        %s307 = scalar_lea.vmem %s1, %s306
        %v308 = vld [vmem:[%s302] sm:$0xff]
        %v309 = vld [vmem:[%s302 + $0x8] sm:$0xff]
        %v310 = vld [vmem:[%s302 + $0x10] sm:$0xff]
        %v311 = vld [vmem:[%s302 + $0x18] sm:$0xff]
        %v312 = vld [vmem:[%s302 + $0x20] sm:$0xff]
        %v313 = vld [vmem:[%s302 + $0x28] sm:$0xff]
        %v314 = vld [vmem:[%s302 + $0x30] sm:$0xff]
        %v315 = vld [vmem:[%s302 + $0x38] sm:$0xff]
        %v316 = vld [vmem:[%s307] sm:$0xff]
        %v317 = vld [vmem:[%s307 + $0x8] sm:$0xff]
        %v318 = vld [vmem:[%s307 + $0x10] sm:$0xff]
        %v319 = vld [vmem:[%s307 + $0x18] sm:$0xff]
        %v320 = vld [vmem:[%s307 + $0x20] sm:$0xff]
        %v321 = vld [vmem:[%s307 + $0x28] sm:$0xff]
        %v322 = vld [vmem:[%s307 + $0x30] sm:$0xff]
        %v323 = vld [vmem:[%s307 + $0x38] sm:$0xff]
        %v324 = vld [vmem:[%s2] sm:$0x1]
        %v325 = vld [vmem:[%s3] sm:$0x1]
        %v326 = vld [vmem:[%s4] sm:$0xff]
        %v327 = vld [vmem:[%s4 + $0x8] sm:$0xff]
        %v328 = vld [vmem:[%s4 + $0x10] sm:$0xff]
        %v329 = vld [vmem:[%s4 + $0x18] sm:$0xff]
        %v330 = vld [vmem:[%s5] sm:$0x1]
        %vm331 = vcmask 261120
        %v332 = vsel %vm331, %v308, 0.0
        %v333 = vsel %vm331, %v309, 0.0
        %v334 = vadd.f32 %v332, %v333
        %v335 = vsel %vm331, %v310, 0.0
        %v336 = vadd.f32 %v334, %v335
        %v337 = vsel %vm331, %v311, 0.0
        %v338 = vadd.f32 %v336, %v337
        %v339 = vsel %vm331, %v312, 0.0
        %v340 = vadd.f32 %v338, %v339
        %v341 = vsel %vm331, %v313, 0.0
        %v342 = vadd.f32 %v340, %v341
        %v343 = vsel %vm331, %v314, 0.0
        %v344 = vadd.f32 %v342, %v343
        %v345 = vsel %vm331, %v315, 0.0
        %v346 = vadd.f32 %v344, %v345
        %v347 = vrot.slane %v346, 4
        %v348 = vadd.f32 %v346, %v347
        %v349 = vrot.slane %v348, 2
        %v350 = vadd.f32 %v348, %v349
        %v351 = vrot.slane %v350, 1
        %v352 = vadd.f32 %v350, %v351
        %v353 = vrcp.pop 64.0
        %v354 = vmul.f32 %v352, %v353
        %v355 = vsub.f32 %v308, %v354
        %v356 = vsub.f32 %v309, %v354
        %v357 = vsub.f32 %v310, %v354
        %v358 = vsub.f32 %v311, %v354
        %v359 = vsub.f32 %v312, %v354
        %v360 = vsub.f32 %v313, %v354
        %v361 = vsub.f32 %v314, %v354
        %v362 = vsub.f32 %v315, %v354
        %v363 = vmul.f32 %v355, %v355
        %v364 = vmul.f32 %v356, %v356
        %v365 = vmul.f32 %v357, %v357
        %v366 = vmul.f32 %v358, %v358
        %v367 = vmul.f32 %v359, %v359
        %v368 = vmul.f32 %v360, %v360
        %v369 = vmul.f32 %v361, %v361
        %v370 = vmul.f32 %v362, %v362
        %v371 = vsel %vm331, %v363, 0.0
        %v372 = vsel %vm331, %v364, 0.0
        %v373 = vadd.f32 %v371, %v372
        %v374 = vsel %vm331, %v365, 0.0
        %v375 = vadd.f32 %v373, %v374
        %v376 = vsel %vm331, %v366, 0.0
        %v377 = vadd.f32 %v375, %v376
        %v378 = vsel %vm331, %v367, 0.0
        %v379 = vadd.f32 %v377, %v378
        %v380 = vsel %vm331, %v368, 0.0
        %v381 = vadd.f32 %v379, %v380
        %v382 = vsel %vm331, %v369, 0.0
        %v383 = vadd.f32 %v381, %v382
        %v384 = vsel %vm331, %v370, 0.0
        %v385 = vadd.f32 %v383, %v384
        %v386 = vrot.slane %v385, 4
        %v387 = vadd.f32 %v385, %v386
        %v388 = vrot.slane %v387, 2
        %v389 = vadd.f32 %v387, %v388
        %v390 = vrot.slane %v389, 1
        %v391 = vadd.f32 %v389, %v390
        %v392 = vmul.f32 %v391, %v353
        %v393 = vadd.f32 %v392, 0.001
        %v394 = vrsqrt.pop %v393
        %v395 = vmul.f32 %v355, %v394
        %v396 = vmul.f32 %v356, %v394
        %v397 = vmul.f32 %v357, %v394
        %v398 = vmul.f32 %v358, %v394
        %v399 = vmul.f32 %v359, %v394
        %v400 = vmul.f32 %v360, %v394
        %v401 = vmul.f32 %v361, %v394
        %v402 = vmul.f32 %v362, %v394
        %v404 = vlaneseq
        %v405 = vshrl.u32 %v404, 7
        %v406 = vsub.s32 0, %v405
        %v407 = vrot.slane %v324, %v406
        %v409 = vmul.f32 %v395, %v407
        %v410 = vmul.f32 %v396, %v407
        %v411 = vmul.f32 %v397, %v407
        %v412 = vmul.f32 %v398, %v407
        %v413 = vmul.f32 %v399, %v407
        %v414 = vmul.f32 %v400, %v407
        %v415 = vmul.f32 %v401, %v407
        %v416 = vmul.f32 %v402, %v407
        %v418 = vlaneseq
        %v419 = vshrl.u32 %v418, 7
        %v420 = vsub.s32 0, %v419
        %v421 = vrot.slane %v325, %v420
        %v423 = vadd.f32 %v409, %v421
        %v424 = vadd.f32 %v410, %v421
        %v425 = vadd.f32 %v411, %v421
        %v426 = vadd.f32 %v412, %v421
        %v427 = vadd.f32 %v413, %v421
        %v428 = vadd.f32 %v414, %v421
        %v429 = vadd.f32 %v415, %v421
        %v430 = vadd.f32 %v416, %v421
        %v431 = vmax.f32 %v423, 0.0
        %v432 = vmax.f32 %v424, 0.0
        %v433 = vmax.f32 %v425, 0.0
        %v434 = vmax.f32 %v426, 0.0
        %v435 = vmax.f32 %v427, 0.0
        %v436 = vmax.f32 %v428, 0.0
        %v437 = vmax.f32 %v429, 0.0
        %v438 = vmax.f32 %v430, 0.0
        %v440 = vlaneseq
        %v441 = vshrl.u32 %v440, 7
        %v442 = vsub.s32 0, %v441
        %v443 = vrot.slane %v330, %v442
        %v446 = vsel %vm331, %v431, 0
        %v449 = vsel %vm331, %v432, 0
        %v452 = vsel %vm331, %v433, 0
        %v455 = vsel %vm331, %v434, 0
        %v458 = vsel %vm331, %v435, 0
        %v461 = vsel %vm331, %v436, 0
        %v464 = vsel %vm331, %v437, 0
        %v467 = vsel %vm331, %v438, 0
        %469 = vmatprep.subr.mxu0 0.0
        %470 = vmatpush1.msra.mxu0 %v326
        %471 = vmatprep.subr.mxu0 0.0
        %472 = vmatpush1.msra.mxu0 %v327
        %473 = vmatprep.subr.mxu0 0.0
        %474 = vmatpush1.msra.mxu0 %v328
        %475 = vmatprep.subr.mxu0 0.0
        %476 = vmatpush1.msra.mxu0 %v329
        %477 = vmatprep.subr.mxu0 0.0
        %478 = vmatpush1.msra.mxu0 0.0
        %479 = vmatprep.subr.mxu0 0.0
        %480 = vmatpush1.msra.mxu0 0.0
        %481 = vmatprep.subr.mxu0 0.0
        %482 = vmatpush1.msra.mxu0 0.0
        %483 = vmatprep.subr.mxu0 0.0
        %484 = vmatpush1.msra.mxu0 0.0
        %485 = vmatprep.subr.mxu0 0.0
        %486 = vmatpush1.msra.mxu0 0.0
        %487 = vmatprep.subr.mxu0 0.0
        %488 = vmatpush1.msra.mxu0 0.0
        %489 = vmatprep.subr.mxu0 0.0
        %490 = vmatpush1.msra.mxu0 0.0
        %491 = vmatprep.subr.mxu0 0.0
        %492 = vmatpush1.msra.mxu0 0.0
        %493 = vmatprep.subr.mxu0 0.0
        %494 = vmatpush1.msra.mxu0 0.0
        %495 = vmatprep.subr.mxu0 0.0
        %496 = vmatpush1.msra.mxu0 0.0
        %497 = vmatprep.subr.mxu0 0.0
        %498 = vmatpush1.msra.mxu0 0.0
        %499 = vmatprep.subr.mxu0 0.0
        %500 = vmatpush1.msra.mxu0 0.0
        %501 = vmatprep.subr.mxu0 0.0
        %502 = vmatpush1.msra.mxu0 0.0
        %503 = vmatprep.subr.mxu0 0.0
        %504 = vmatpush1.msra.mxu0 0.0
        %505 = vmatprep.subr.mxu0 0.0
        %506 = vmatpush1.msra.mxu0 0.0
        %507 = vmatprep.subr.mxu0 0.0
        %508 = vmatpush1.msra.mxu0 0.0
        %509 = vmatprep.subr.mxu0 0.0
        %510 = vmatpush1.msra.mxu0 0.0
        %511 = vmatprep.subr.mxu0 0.0
        %512 = vmatpush1.msra.mxu0 0.0
        %513 = vmatprep.subr.mxu0 0.0
        %514 = vmatpush1.msra.mxu0 0.0
        %515 = vmatprep.subr.mxu0 0.0
        %516 = vmatpush1.msra.mxu0 0.0
        %517 = vmatprep.subr.mxu0 0.0
        %518 = vmatpush1.msra.mxu0 0.0
        %519 = vmatprep.subr.mxu0 0.0
        %520 = vmatpush1.msra.mxu0 0.0
        %521 = vmatprep.subr.mxu0 0.0
        %522 = vmatpush1.msra.mxu0 0.0
        %523 = vmatprep.subr.mxu0 0.0
        %524 = vmatpush1.msra.mxu0 0.0
        %525 = vmatprep.subr.mxu0 0.0
        %526 = vmatpush1.msra.mxu0 0.0
        %527 = vmatprep.subr.mxu0 0.0
        %528 = vmatpush1.msra.mxu0 0.0
        %529 = vmatprep.subr.mxu0 0.0
        %530 = vmatpush1.msra.mxu0 0.0
        %531 = vmatprep.subr.mxu0 0.0
        %532 = vmatpush1.msra.mxu0 0.0
        %533 = vmatprep.mubr.f32.mxu0 0.0
        %534 = vmatmul.mubr.f32.gmra.mrb[0].mxu0 %v446
        %v535 = vpop.f32.mrb[0].mxu0
        %v536 = vadd.f32 %v443, %v535
        %v537 = vpop.f32.mrb[0].mxu0
        %538 = vmatprep.mubr.f32.mxu0 0.0
        %539 = vmatmul.mubr.f32.gmra.mrb[0].mxu0 %v449
        %v540 = vpop.f32.mrb[0].mxu0
        %v541 = vadd.f32 %v443, %v540
        %v542 = vpop.f32.mrb[0].mxu0
        %543 = vmatprep.mubr.f32.mxu0 0.0
        %544 = vmatmul.mubr.f32.gmra.mrb[0].mxu0 %v452
        %v545 = vpop.f32.mrb[0].mxu0
        %v546 = vadd.f32 %v443, %v545
        %v547 = vpop.f32.mrb[0].mxu0
        %548 = vmatprep.mubr.f32.mxu0 0.0
        %549 = vmatmul.mubr.f32.gmra.mrb[0].mxu0 %v455
        %v550 = vpop.f32.mrb[0].mxu0
        %v551 = vadd.f32 %v443, %v550
        %v552 = vpop.f32.mrb[0].mxu0
        %553 = vmatprep.mubr.f32.mxu0 0.0
        %554 = vmatmul.mubr.f32.gmra.mrb[0].mxu0 %v458
        %v555 = vpop.f32.mrb[0].mxu0
        %v556 = vadd.f32 %v443, %v555
        %v557 = vpop.f32.mrb[0].mxu0
        %558 = vmatprep.mubr.f32.mxu0 0.0
        %559 = vmatmul.mubr.f32.gmra.mrb[0].mxu0 %v461
        %v560 = vpop.f32.mrb[0].mxu0
        %v561 = vadd.f32 %v443, %v560
        %v562 = vpop.f32.mrb[0].mxu0
        %563 = vmatprep.mubr.f32.mxu0 0.0
        %564 = vmatmul.mubr.f32.gmra.mrb[0].mxu0 %v464
        %v565 = vpop.f32.mrb[0].mxu0
        %v566 = vadd.f32 %v443, %v565
        %v567 = vpop.f32.mrb[0].mxu0
        %568 = vmatprep.mubr.f32.mxu0 0.0
        %569 = vmatmul.mubr.f32.gmra.mrb[0].mxu0 %v467
        %v570 = vpop.f32.mrb[0].mxu0
        %v571 = vadd.f32 %v443, %v570
        %v572 = vpop.f32.mrb[0].mxu0
        %573 = vdwg.mxu0
        %vm574 = vcmask 130048
        %v575 = vsel %vm574, %v536, -inf
        %v576 = vsel %vm574, %v541, -inf
        %v577 = vsel %vm574, %v546, -inf
        %v578 = vsel %vm574, %v551, -inf
        %v579 = vsel %vm574, %v556, -inf
        %v580 = vmax.f32 %v575, %v579
        %v581 = vsel %vm574, %v561, -inf
        %v582 = vmax.f32 %v576, %v581
        %v583 = vsel %vm574, %v566, -inf
        %v584 = vmax.f32 %v577, %v583
        %v585 = vsel %vm574, %v571, -inf
        %v586 = vmax.f32 %v578, %v585
        %v587 = vmax.f32 %v580, %v582
        %v588 = vmax.f32 %v584, %v586
        %v589 = vmax.f32 %v587, %v588
        %v590 = vrot.slane %v589, 4
        %v591 = vmax.f32 %v589, %v590
        %v592 = vrot.slane %v591, 2
        %v593 = vmax.f32 %v591, %v592
        %v594 = vrot.slane %v593, 1
        %v595 = vmax.f32 %v593, %v594
        %v596 = vsub.f32 %v536, %v595
        %v597 = vsub.f32 %v541, %v595
        %v598 = vsub.f32 %v546, %v595
        %v599 = vsub.f32 %v551, %v595
        %v600 = vsub.f32 %v556, %v595
        %v601 = vsub.f32 %v561, %v595
        %v602 = vsub.f32 %v566, %v595
        %v603 = vsub.f32 %v571, %v595
        %v604 = vmul.f32 %v596, 1.442695
        %v605 = vpow.pop %v604
        %v606 = vmul.f32 %v597, 1.442695
        %v607 = vpow.pop %v606
        %v608 = vmul.f32 %v598, 1.442695
        %v609 = vpow.pop %v608
        %v610 = vmul.f32 %v599, 1.442695
        %v611 = vpow.pop %v610
        %v612 = vmul.f32 %v600, 1.442695
        %v613 = vpow.pop %v612
        %v614 = vmul.f32 %v601, 1.442695
        %v615 = vpow.pop %v614
        %v616 = vmul.f32 %v602, 1.442695
        %v617 = vpow.pop %v616
        %v618 = vmul.f32 %v603, 1.442695
        %v619 = vpow.pop %v618
        %v620 = vsel %vm574, %v605, 0.0
        %v621 = vsel %vm574, %v607, 0.0
        %v622 = vadd.f32 %v620, %v621
        %v623 = vsel %vm574, %v609, 0.0
        %v624 = vadd.f32 %v622, %v623
        %v625 = vsel %vm574, %v611, 0.0
        %v626 = vadd.f32 %v624, %v625
        %v627 = vsel %vm574, %v613, 0.0
        %v628 = vadd.f32 %v626, %v627
        %v629 = vsel %vm574, %v615, 0.0
        %v630 = vadd.f32 %v628, %v629
        %v631 = vsel %vm574, %v617, 0.0
        %v632 = vadd.f32 %v630, %v631
        %v633 = vsel %vm574, %v619, 0.0
        %v634 = vadd.f32 %v632, %v633
        %v635 = vrot.slane %v634, 4
        %v636 = vadd.f32 %v634, %v635
        %v637 = vrot.slane %v636, 2
        %v638 = vadd.f32 %v636, %v637
        %v639 = vrot.slane %v638, 1
        %v640 = vadd.f32 %v638, %v639
        %v641 = vrcp.pop %v640
        %v642 = vmul.f32 %v605, %v641
        %v643 = vmul.f32 %v607, %v641
        %v644 = vmul.f32 %v609, %v641
        %v645 = vmul.f32 %v611, %v641
        %v646 = vmul.f32 %v613, %v641
        %v647 = vmul.f32 %v615, %v641
        %v648 = vmul.f32 %v617, %v641
        %v649 = vmul.f32 %v619, %v641
        %650 = vxpose.xlu0.b32.start [1/16] %v642, 128
        %651 = vxpose.xlu0.b32.cont [2/16] %v643, 128
        %652 = vxpose.xlu0.b32.cont [3/16] %v644, 128
        %653 = vxpose.xlu0.b32.cont [4/16] %v645, 128
        %654 = vxpose.xlu0.b32.cont [5/16] %v646, 128
        %655 = vxpose.xlu0.b32.cont [6/16] %v647, 128
        %656 = vxpose.xlu0.b32.cont [7/16] %v648, 128
        %657 = vxpose.xlu0.b32.cont [8/16] %v649, 128
        %658 = vxpose.xlu0.b32.cont [9/16] 0.0, 128
        %659 = vxpose.xlu0.b32.cont [10/16] 0.0, 128
        %660 = vxpose.xlu0.b32.cont [11/16] 0.0, 128
        %661 = vxpose.xlu0.b32.cont [12/16] 0.0, 128
        %662 = vxpose.xlu0.b32.cont [13/16] 0.0, 128
        %663 = vxpose.xlu0.b32.cont [14/16] 0.0, 128
        %664 = vxpose.xlu0.b32.cont [15/16] 0.0, 128
        %665 = vxpose.xlu0.b32.end [16/16] 0.0, 128
        %v666 = vpop.trf.xlu0
        %v667 = vpop.trf.xlu0
        %v668 = vpop.trf.xlu0
        %v669 = vpop.trf.xlu0
        %v670 = vpop.trf.xlu0
        %v671 = vpop.trf.xlu0
        %v672 = vpop.trf.xlu0
        %v673 = vpop.trf.xlu0
        %v674 = vpop.trf.xlu0
        %v675 = vpop.trf.xlu0
        %v676 = vpop.trf.xlu0
        %v677 = vpop.trf.xlu0
        %v678 = vpop.trf.xlu0
        %v679 = vpop.trf.xlu0
        %v680 = vpop.trf.xlu0
        %v681 = vpop.trf.xlu0
        %vm682 = vcmask 523264
        %v684 = vsel %vm682, %v666, 0
        %v687 = vsel %vm682, %v667, 0
        %689 = vmatprep.subr.mxu0 0.0
        %690 = vmatpush1.msra.mxu0 %v308
        %691 = vmatprep.subr.mxu0 0.0
        %692 = vmatpush1.msra.mxu0 %v309
        %693 = vmatprep.subr.mxu0 0.0
        %694 = vmatpush1.msra.mxu0 %v310
        %695 = vmatprep.subr.mxu0 0.0
        %696 = vmatpush1.msra.mxu0 %v311
        %697 = vmatprep.subr.mxu0 0.0
        %698 = vmatpush1.msra.mxu0 %v312
        %699 = vmatprep.subr.mxu0 0.0
        %700 = vmatpush1.msra.mxu0 %v313
        %701 = vmatprep.subr.mxu0 0.0
        %702 = vmatpush1.msra.mxu0 %v314
        %703 = vmatprep.subr.mxu0 0.0
        %704 = vmatpush1.msra.mxu0 %v315
        %705 = vmatprep.subr.mxu0 0.0
        %706 = vmatpush1.msra.mxu0 0.0
        %707 = vmatprep.subr.mxu0 0.0
        %708 = vmatpush1.msra.mxu0 0.0
        %709 = vmatprep.subr.mxu0 0.0
        %710 = vmatpush1.msra.mxu0 0.0
        %711 = vmatprep.subr.mxu0 0.0
        %712 = vmatpush1.msra.mxu0 0.0
        %713 = vmatprep.subr.mxu0 0.0
        %714 = vmatpush1.msra.mxu0 0.0
        %715 = vmatprep.subr.mxu0 0.0
        %716 = vmatpush1.msra.mxu0 0.0
        %717 = vmatprep.subr.mxu0 0.0
        %718 = vmatpush1.msra.mxu0 0.0
        %719 = vmatprep.subr.mxu0 0.0
        %720 = vmatpush1.msra.mxu0 0.0
        %721 = vmatprep.subr.mxu0 0.0
        %722 = vmatpush1.msra.mxu0 0.0
        %723 = vmatprep.subr.mxu0 0.0
        %724 = vmatpush1.msra.mxu0 0.0
        %725 = vmatprep.subr.mxu0 0.0
        %726 = vmatpush1.msra.mxu0 0.0
        %727 = vmatprep.subr.mxu0 0.0
        %728 = vmatpush1.msra.mxu0 0.0
        %729 = vmatprep.subr.mxu0 0.0
        %730 = vmatpush1.msra.mxu0 0.0
        %731 = vmatprep.subr.mxu0 0.0
        %732 = vmatpush1.msra.mxu0 0.0
        %733 = vmatprep.subr.mxu0 0.0
        %734 = vmatpush1.msra.mxu0 0.0
        %735 = vmatprep.subr.mxu0 0.0
        %736 = vmatpush1.msra.mxu0 0.0
        %737 = vmatprep.subr.mxu0 0.0
        %738 = vmatpush1.msra.mxu0 0.0
        %739 = vmatprep.subr.mxu0 0.0
        %740 = vmatpush1.msra.mxu0 0.0
        %741 = vmatprep.subr.mxu0 0.0
        %742 = vmatpush1.msra.mxu0 0.0
        %743 = vmatprep.subr.mxu0 0.0
        %744 = vmatpush1.msra.mxu0 0.0
        %745 = vmatprep.subr.mxu0 0.0
        %746 = vmatpush1.msra.mxu0 0.0
        %747 = vmatprep.subr.mxu0 0.0
        %748 = vmatpush1.msra.mxu0 0.0
        %749 = vmatprep.subr.mxu0 0.0
        %750 = vmatpush1.msra.mxu0 0.0
        %751 = vmatprep.subr.mxu0 0.0
        %752 = vmatpush1.msra.mxu0 0.0
        %753 = vmatprep.mubr.f32.mxu0 0.0
        %754 = vmatmul.mubr.f32.gmra.mrb[0].mxu0 %v684
        %v755 = vpop.f32.mrb[0].mxu0
        %v756 = vadd.f32 0.0, %v755
        %v757 = vpop.f32.mrb[0].mxu0
        %758 = vmatprep.mubr.f32.mxu0 0.0
        %759 = vmatmul.mubr.f32.gmra.mrb[0].mxu0 %v687
        %v760 = vpop.f32.mrb[0].mxu0
        %v761 = vadd.f32 0.0, %v760
        %v762 = vpop.f32.mrb[0].mxu0
        %763 = vdwg.mxu0
        %764 = vst.msk [vmem:[%s290] sm:$0xff] %vm331, %v756
        %765 = vst.msk [vmem:[%s290 + $0x8] sm:$0xff] %vm331, %v761
        %766 = vmatprep.subr.mxu0 0.0
        %767 = vmatpush1.msra.mxu0 %v316
        %768 = vmatprep.subr.mxu0 0.0
        %769 = vmatpush1.msra.mxu0 %v317
        %770 = vmatprep.subr.mxu0 0.0
        %771 = vmatpush1.msra.mxu0 %v318
        %772 = vmatprep.subr.mxu0 0.0
        %773 = vmatpush1.msra.mxu0 %v319
        %774 = vmatprep.subr.mxu0 0.0
        %775 = vmatpush1.msra.mxu0 %v320
        %776 = vmatprep.subr.mxu0 0.0
        %777 = vmatpush1.msra.mxu0 %v321
        %778 = vmatprep.subr.mxu0 0.0
        %779 = vmatpush1.msra.mxu0 %v322
        %780 = vmatprep.subr.mxu0 0.0
        %781 = vmatpush1.msra.mxu0 %v323
        %782 = vmatprep.subr.mxu0 0.0
        %783 = vmatpush1.msra.mxu0 0.0
        %784 = vmatprep.subr.mxu0 0.0
        %785 = vmatpush1.msra.mxu0 0.0
        %786 = vmatprep.subr.mxu0 0.0
        %787 = vmatpush1.msra.mxu0 0.0
        %788 = vmatprep.subr.mxu0 0.0
        %789 = vmatpush1.msra.mxu0 0.0
        %790 = vmatprep.subr.mxu0 0.0
        %791 = vmatpush1.msra.mxu0 0.0
        %792 = vmatprep.subr.mxu0 0.0
        %793 = vmatpush1.msra.mxu0 0.0
        %794 = vmatprep.subr.mxu0 0.0
        %795 = vmatpush1.msra.mxu0 0.0
        %796 = vmatprep.subr.mxu0 0.0
        %797 = vmatpush1.msra.mxu0 0.0
        %798 = vmatprep.subr.mxu0 0.0
        %799 = vmatpush1.msra.mxu0 0.0
        %800 = vmatprep.subr.mxu0 0.0
        %801 = vmatpush1.msra.mxu0 0.0
        %802 = vmatprep.subr.mxu0 0.0
        %803 = vmatpush1.msra.mxu0 0.0
        %804 = vmatprep.subr.mxu0 0.0
        %805 = vmatpush1.msra.mxu0 0.0
        %806 = vmatprep.subr.mxu0 0.0
        %807 = vmatpush1.msra.mxu0 0.0
        %808 = vmatprep.subr.mxu0 0.0
        %809 = vmatpush1.msra.mxu0 0.0
        %810 = vmatprep.subr.mxu0 0.0
        %811 = vmatpush1.msra.mxu0 0.0
        %812 = vmatprep.subr.mxu0 0.0
        %813 = vmatpush1.msra.mxu0 0.0
        %814 = vmatprep.subr.mxu0 0.0
        %815 = vmatpush1.msra.mxu0 0.0
        %816 = vmatprep.subr.mxu0 0.0
        %817 = vmatpush1.msra.mxu0 0.0
        %818 = vmatprep.subr.mxu0 0.0
        %819 = vmatpush1.msra.mxu0 0.0
        %820 = vmatprep.subr.mxu0 0.0
        %821 = vmatpush1.msra.mxu0 0.0
        %822 = vmatprep.subr.mxu0 0.0
        %823 = vmatpush1.msra.mxu0 0.0
        %824 = vmatprep.subr.mxu0 0.0
        %825 = vmatpush1.msra.mxu0 0.0
        %826 = vmatprep.subr.mxu0 0.0
        %827 = vmatpush1.msra.mxu0 0.0
        %828 = vmatprep.subr.mxu0 0.0
        %829 = vmatpush1.msra.mxu0 0.0
        %830 = vmatprep.mubr.f32.mxu0 0.0
        %831 = vmatmul.mubr.f32.gmra.mrb[0].mxu0 %v684
        %v832 = vpop.f32.mrb[0].mxu0
        %v833 = vadd.f32 0.0, %v832
        %v834 = vpop.f32.mrb[0].mxu0
        %835 = vmatprep.mubr.f32.mxu0 0.0
        %836 = vmatmul.mubr.f32.gmra.mrb[0].mxu0 %v687
        %v837 = vpop.f32.mrb[0].mxu0
        %v838 = vadd.f32 0.0, %v837
        %v839 = vpop.f32.mrb[0].mxu0
        %840 = vdwg.mxu0
        %841 = vst.msk [vmem:[%s297] sm:$0xff] %vm574, %v833
        %842 = vst.msk [vmem:[%s297 + $0x8] sm:$0xff] %vm574, %v838
        %s843 = sand.u32 %s169, 1
        %s844 = scalar_lea.sflag [#allocation3], %s843
        %s845 = sand.u32 %s169, 1
        %s846 = smul.addr %s845, 16
        %s847 = scalar_lea.vmem [#allocation2], %s846
        %s848 = sand.u32 %s195, 1
        %s849 = scalar_lea.sflag [#allocation5], %s848
        %s850 = sand.u32 %s195, 1
        %s851 = smul.addr %s850, 16
        %s852 = scalar_lea.vmem [#allocation4], %s851
        // Predicated region
        $region45: #{tpu_custom_call.1} parent=43 // pred_check
          %p853 = pneg %p179
        $region46: #{tpu_custom_call.1} parent=43 // pred_check_branch
          %855 = sbr.rel (%p853) target = $region48
        $region47: #{tpu_custom_call.1} parent=43 // pred_region
          %s857 = ssub.s32 256, 256
          %858 = vsyncadd %s844, %s857
          %s859 = smul.addr %s25, 2
          %s860 = smul.addr %s859, 128
          %s861 = scalar_lea.hbm %s6, %s860
          %s862 = sshll.u32 %s847, 4
          %s863 = int_to_ptr.vmem [resolvable:$true] %s862
          %868 = dma.vmem_to_hbm [thread:$0]  %s863, 256, %s861, %s844, 128, 128, 8
        $region48: #{tpu_custom_call.1} parent=43 // pred_fallthru
          _
        // Predicated region
        $region49: #{tpu_custom_call.1} parent=43 // pred_check
          %p869 = pneg %p205
        $region50: #{tpu_custom_call.1} parent=43 // pred_check_branch
          %871 = sbr.rel (%p869) target = $region52
        $region51: #{tpu_custom_call.1} parent=43 // pred_region
          %s873 = ssub.s32 256, 256
          %874 = vsyncadd %s849, %s873
          %s875 = smul.addr %s25, 2
          %s876 = smul.addr %s875, 128
          %s877 = scalar_lea.hbm %s7, %s876
          %s878 = sshll.u32 %s852, 4
          %s879 = int_to_ptr.vmem [resolvable:$true] %s878
          %884 = dma.vmem_to_hbm [thread:$0]  %s879, 256, %s877, %s849, 128, 128, 8
        $region52: #{tpu_custom_call.1} parent=43 // pred_fallthru
          _
      $region44: #{tpu_custom_call.1} parent=5 // pred_fallthru
        _
      %p885 = scmp.le.s32.totalorder 2, %s20
      // Predicated region
      $region53: #{tpu_custom_call.1} parent=5 // pred_check
        %p886 = pneg %p885
      $region54: #{tpu_custom_call.1} parent=5 // pred_check_branch
        %888 = sbr.rel (%p886) target = $region56
      $region55: #{tpu_custom_call.1} parent=5 // pred_region
        %s889 = ssub.s32 %s20, 2
        // Predicated region
        $region57: #{tpu_custom_call.1} parent=55 // pred_check
          %p890 = pneg %p185
        $region58: #{tpu_custom_call.1} parent=55 // pred_check_branch
          %892 = sbr.rel (%p890) target = $region60
        $region59: #{tpu_custom_call.1} parent=55 // pred_region
          %s893 = sand.u32 %s170, 1
          %s894 = scalar_lea.sflag [#allocation3], %s893
          %s895 = sand.u32 %s170, 1
          %s896 = smul.addr %s895, 16
          %s897 = scalar_lea.vmem [#allocation2], %s896
          %898 = dma.done %s894, 256
        $region60: #{tpu_custom_call.1} parent=55 // pred_fallthru
          _
        // Predicated region
        $region61: #{tpu_custom_call.1} parent=55 // pred_check
          %p899 = pneg %p211
        $region62: #{tpu_custom_call.1} parent=55 // pred_check_branch
          %901 = sbr.rel (%p899) target = $region64
        $region63: #{tpu_custom_call.1} parent=55 // pred_region
          %s902 = sand.u32 %s196, 1
          %s903 = scalar_lea.sflag [#allocation5], %s902
          %s904 = sand.u32 %s196, 1
          %s905 = smul.addr %s904, 16
          %s906 = scalar_lea.vmem [#allocation4], %s905
          %907 = dma.done %s903, 256
        $region64: #{tpu_custom_call.1} parent=55 // pred_fallthru
          _
      $region56: #{tpu_custom_call.1} parent=5 // pred_fallthru
        _
    $region6: #{tpu_custom_call.1} parent=1 // loop_footer
      %s24 = sadd.s32 1, %s20
    $region7: #{tpu_custom_call.1} parent=1 // loop_footer_branch
      %19 = sbr.rel target = $region3
    $region8: #{tpu_custom_call.1} parent=1 // loop_exit
      _
    %908 = vsyncpa [#allocation3], 1
    %s909 = scalar_lea.sflag [#allocation3], 1
    %910 = vsyncpa %s909, 1
    %911 = vsyncpa [#allocation5], 1
    %s912 = scalar_lea.sflag [#allocation5], 1
    %913 = vsyncpa %s912, 1

</llo_original>
